<compile_context>
chip_gen: v6e
topology: v6e:2x2x1
jax: 0.10.0
libtpu: 0.0.40
codegen_flags: <defaults>
</compile_context>

<pallas_src>
import jax
import jax.numpy as jnp
from jax import lax
from jax.experimental import pallas as pl
from jax.experimental.pallas import tpu as pltpu

_LANE = 128  # TPU lane width; last block dims want multiples of this.


def _embedding_onehot_t_kernel(ids_ref, table_t_ref, out_t_ref):
    """One block of (transposed) output rows via table^T x one_hot^T MXU matmul.

    ids_ref     : VMEM (1, BR)      int32 -- flat indices for this block
    table_t_ref : VMEM (D, V_pad)         -- pre-padded, pre-transposed table
    out_t_ref   : VMEM (D, BR)            -- gathered rows, transposed (lane-dense)
    """
    v_pad = table_t_ref.shape[1]
    br = out_t_ref.shape[1]
    ids = ids_ref[...]                                        # (1, BR) int32
    iota = lax.broadcasted_iota(jnp.int32, (v_pad, br), 0)    # vocab ids down sublanes
    # One-hot^T in the table's dtype (bf16 tables stay MXU-native on v5e);
    # exact because each output element has exactly one nonzero term.
    one_hot_t = (ids == iota).astype(table_t_ref.dtype)       # (V_pad, BR)
    out_t_ref[...] = jnp.dot(
        table_t_ref[...], one_hot_t, preferred_element_type=jnp.float32
    ).astype(out_t_ref.dtype)


def prepare_embedding_table(weight):
    """Init-time preparation (call ONCE, outside the forward hot path).

    Pads the vocab (MXU contraction dim) up to a multiple of 128 and
    transposes to (D, V_pad) so the forward wrapper does no table-sized
    HBM round trips per call.
    """
    V, D = weight.shape
    v_pad = pl.cdiv(V, _LANE) * _LANE
    w = weight if v_pad == V else jnp.pad(weight, ((0, v_pad - V), (0, 0)))
    return jnp.asarray(w.T)  # (D, V_pad)


def _choose_block_rows(n128, max_block_rows):
    """Pick BR: a 128-multiple <= max_block_rows that minimizes tail padding."""
    if n128 <= max_block_rows:
        return n128  # tiny N: single grid step; splitting only adds overhead
    for cand in range(max_block_rows, _LANE - 1, -_LANE):
        if n128 % cand == 0:
            return cand  # divides the workload -> zero tail padding
    return max_block_rows


def embedding_forward(ids, table_t, *, max_block_rows=512):
    """Pallas equivalent of torch.nn.Embedding(V, D)(ids).

    `table_t` must come from prepare_embedding_table(weight): shape (D, V_pad).
    """
    orig_shape = ids.shape
    flat = ids.reshape(-1).astype(jnp.int32)
    n = flat.shape[0]
    d, v_pad = table_t.shape
    itemsize = jnp.dtype(table_t.dtype).itemsize

    # Row blocking: 128-multiple (lane-dense output), >=2 "parallel" steps for
    # large N (v7x megacore sharding), single step for tiny N.
    n128 = pl.cdiv(n, _LANE) * _LANE
    br = _choose_block_rows(n128, max_block_rows)
    n_pad = pl.cdiv(n128, br) * br
    if n_pad != n:
        # -1 never matches the iota -> padded columns come out as zeros (no OOB).
        flat = jnp.pad(flat, (0, n_pad - n), constant_values=-1)
    ids_2d = flat.reshape(1, n_pad)

    # Explicit VMEM budget check (v7x: 64 MiB physical / 32 MiB default-scoped).
    # table^T (x2 for worst-case double buffering) + ids/out blocks (double
    # buffered) + one-hot / f32 accumulator temporaries.
    vmem_bytes = (
        2 * d * v_pad * itemsize
        + 2 * br * 4
        + 2 * d * br * 4
        + v_pad * br * max(itemsize, 4)
    )
    assert vmem_bytes < 24 * 1024 * 1024, (
        "one-hot embedding path would exceed the VMEM budget; tile the vocab "
        "(K grid axis: 128 on v5e, 256 on v6e/v7x) or switch to the "
        "scalar-prefetch row-gather path for large V"
    )

    out_t = pl.pallas_call(
        _embedding_onehot_t_kernel,
        out_shape=jax.ShapeDtypeStruct((d, n_pad), table_t.dtype),
        grid_spec=pltpu.PrefetchScalarGridSpec(
            num_scalar_prefetch=0,
            grid=(n_pad // br,),
            in_specs=[
                pl.BlockSpec((1, br), lambda i: (0, i)),      # dense row of ids
                pl.BlockSpec((d, v_pad), lambda i: (0, 0)),   # full table^T (grid-invariant)
            ],
            # Lane-dense output block: last dim BR is a multiple of 128.
            out_specs=pl.BlockSpec((d, br), lambda i: (0, i)),
        ),
        compiler_params=pltpu.CompilerParams(
            dimension_semantics=("parallel",)),
    )(ids_2d, table_t)

    # One wrapper transpose back to the nn.Embedding output layout (..., D).
    # (Price of the lane-dense kernel output; consumers that accept (D, N)
    # layout can skip it.)
    return out_t.T[:n].reshape(*orig_shape, d)


if __name__ == "__main__":
    # args.consensus_builder_dim = 16           -> vocab V = 17
    # args.consensus_builder_embedding_dim = 32 -> D = 32
    consensus_builder_dim = 16
    consensus_builder_embedding_dim = 32
    V = consensus_builder_dim + 1
    D = consensus_builder_embedding_dim

    key = jax.random.PRNGKey(0)
    k_ids, k_w = jax.random.split(key)

    # Deterministic "nn.Embedding" weight: N(0, 1), same as torch default init.
    weight = jax.random.normal(k_w, (V, D), dtype=jnp.float32)

    # id tensor: batch=2, seq=8 integer indices in [0, V)
    ids = jax.random.randint(k_ids, (2, 8), 0, V, dtype=jnp.int32)

    # Init-time table prep (pad + transpose), hoisted out of the forward path.
    table_t = prepare_embedding_table(weight)

    fwd = jax.jit(embedding_forward)
    out = jax.block_until_ready(fwd(ids, table_t))

    # Reference: plain JAX gather (semantics of nn.Embedding forward).
    ref = jnp.take(weight, ids, axis=0)
    assert out.shape == (2, 8, D), out.shape
    assert out.dtype == weight.dtype
    assert jnp.allclose(out, ref), "mismatch vs reference gather"

    print("KERNEL_OK")
</pallas_src>

<mosaic_0001>
module attributes {stable_mosaic.version = 11 : i64} {
  func.func @_embedding_onehot_t_kernel(%arg0: i32, %arg1: memref<1x128xi32, #tpu.memory_space<vmem>>, %arg2: memref<32x128xf32, #tpu.memory_space<vmem>>, %arg3: memref<32x128xf32, #tpu.memory_space<vmem>>) attributes {dimension_semantics = [#tpu.dimension_semantics<parallel>], iteration_bounds = array<i64: 1>, scalar_prefetch = 0 : i64, scratch_operands = 0 : i64, tpu.core_type = #tpu.core_type<tc>, window_params = [{transform_indices = @transform_0, window_bounds = array<i64: 1, 128>}, {pipeline_mode = #tpu.pipeline_mode<synchronous>, transform_indices = @transform_1, window_bounds = array<i64: 32, 128>}, {transform_indices = @transform_2, window_bounds = array<i64: 32, 128>}]} {
    %c0 = arith.constant 0 : index
    %c0_0 = arith.constant 0 : index
    %0 = vector.load %arg1[%c0, %c0_0] : memref<1x128xi32, #tpu.memory_space<vmem>>, vector<1x128xi32>
    %1 = tpu.iota {dimensions = array<i32: 0>} : vector<128x128xi32>
    %2 = vector.broadcast %0 : vector<1x128xi32> to vector<128x128xi32>
    %3 = arith.cmpi eq, %2, %1 : vector<128x128xi32>
    %4 = arith.extui %3 : vector<128x128xi1> to vector<128x128xi32>
    %5 = arith.sitofp %4 : vector<128x128xi32> to vector<128x128xf32>
    %c0_1 = arith.constant 0 : index
    %c0_2 = arith.constant 0 : index
    %6 = vector.load %arg2[%c0_1, %c0_2] : memref<32x128xf32, #tpu.memory_space<vmem>>, vector<32x128xf32>
    %cst = arith.constant dense<0.000000e+00> : vector<32x128xf32>
    %7 = tpu.matmul %6, %5, %cst {dimension_numbers = #tpu.dot_dimension_numbers<[1], [0], [0], [1], [0, 0, 1, 1], [], []>} : vector<32x128xf32>, vector<128x128xf32>, vector<32x128xf32> -> vector<32x128xf32>
    %c0_3 = arith.constant 0 : index
    %c0_4 = arith.constant 0 : index
    %8 = vector.load %arg3[%c0_3, %c0_4] : memref<32x128xf32, #tpu.memory_space<vmem>>, vector<32x128xf32>
    tpu.vector_store %arg3[%c0_3, %c0_4], %7 {strides = array<i32>} : memref<32x128xf32, #tpu.memory_space<vmem>>, vector<32x128xf32>,
    return
  }
  func.func @transform_0(%arg0: i32) -> (i32, i32) {
    %c0_i32 = arith.constant 0 : i32
    %c0_i32_0 = arith.constant 0 : i32
    return %c0_i32, %arg0 : i32, i32
  }
  func.func @transform_1(%arg0: i32) -> (i32, i32) {
    %c0_i32 = arith.constant 0 : i32
    %c0_i32_0 = arith.constant 0 : i32
    %c0_i32_1 = arith.constant 0 : i32
    return %c0_i32, %c0_i32_0 : i32, i32
  }
  func.func @transform_2(%arg0: i32) -> (i32, i32) {
    %c0_i32 = arith.constant 0 : i32
    %c0_i32_0 = arith.constant 0 : i32
    return %c0_i32, %arg0 : i32, i32
  }
}

</mosaic_0001>

<llo_original>
// kernel: embedding_forward.1
$region0: #{embedding_forward.1}
  #allocation0 [shape = 'u32[]', space=smem, size = 0x4, offset = 0x4, fixed_abs, tag = 'smem constant byte address 0x4 - core index']
  #allocation1 [shape = 'u32[144,128]{1,0:T(1,128)}', space=vmem, size = 0x12000, scoped, tag = 'internal scratch']
  %s0 = inlined_call_operand.vmem [shape: s32[1,128], index: 0, kind: input, shape index: {}]
  %s1 = inlined_call_operand.hbm [shape: f32[32,128], index: 1, kind: input, shape index: {}]
  %s2 = inlined_call_operand.vmem [shape: f32[32,128], index: 2, kind: output, shape index: {}]
  %s3 = sld [smem:[#allocation0]]
  $region22: #{embedding_forward.1} parent=0
    _
  %s5 = ssub.s32 1, %s3
  %s6 = scalar_select 0, %s5, %s3
  $region1: #{embedding_forward.1} parent=0
    #allocation2 [shape = 'u8[16384]{0}', space=vmem, size = 0x4000, scoped, tag = 'input window, operand 1, single buffered']
    #allocation3 [shape = 's32[1]{0}', space=sflag, size = 0x4, scoped, tag = 'scoped memory for embedding_forward.1']
    %7 = vsyncpa [#allocation3], 0
    // Predicated region
    $region2: #{embedding_forward.1} parent=1 // pred_check
      _
    $region3: #{embedding_forward.1} parent=1 // pred_check_branch
      %9 = sbr.rel (0) target = $region5
    $region4: #{embedding_forward.1} parent=1 // pred_region
      _
    $region5: #{embedding_forward.1} parent=1 // pred_fallthru
      _
    // Predicated region
    $region6: #{embedding_forward.1} parent=1 // pred_check
      _
    $region7: #{embedding_forward.1} parent=1 // pred_check_branch
      %11 = sbr.rel (0) target = $region9
    $region8: #{embedding_forward.1} parent=1 // pred_region
      %s13 = ssub.s32 512, 512
      %14 = vsyncadd [#allocation3], %s13
      %s15 = sshll.u32 [#allocation2], 4
      %s16 = int_to_ptr.vmem [resolvable:$true] %s15
      %21 = dma.hbm_to_vmem [thread:$0]  %s1, 512, %s16, [#allocation3], 128, 128, 8
    $region9: #{embedding_forward.1} parent=1 // pred_fallthru
      _
    // Predicated region
    $region10: #{embedding_forward.1} parent=1 // pred_check
      _
    $region11: #{embedding_forward.1} parent=1 // pred_check_branch
      %23 = sbr.rel (0) target = $region13
    $region12: #{embedding_forward.1} parent=1 // pred_region
      %24 = dma.done [#allocation3], 512
    $region13: #{embedding_forward.1} parent=1 // pred_fallthru
      _
    %v25 = vld [vmem:[%s0] sm:$0x1]
    %v26 = vlaneseq
    %v27 = vshrl.u32 %v26, 7
    %v28 = vadd.s32 %v27, 8
    %v29 = vadd.s32 %v27, 16
    %v30 = vadd.s32 %v27, 24
    %v31 = vadd.s32 %v27, 32
    %v32 = vadd.s32 %v27, 40
    %v33 = vadd.s32 %v27, 48
    %v34 = vadd.s32 %v27, 56
    %v35 = vadd.s32 %v27, 64
    %v36 = vadd.s32 %v27, 72
    %v37 = vadd.s32 %v27, 80
    %v38 = vadd.s32 %v27, 88
    %v39 = vadd.s32 %v27, 96
    %v40 = vadd.s32 %v27, 104
    %v41 = vadd.s32 %v27, 112
    %v42 = vadd.s32 %v27, 120
    %v43 = vlaneseq
    %v44 = vshrl.u32 %v43, 7
    %v45 = vsub.s32 0, %v44
    %v46 = vrot.slane %v25, %v45
    %vm47 = vcmp.eq.s32.totalorder %v46, %v27
    %vm48 = vcmp.eq.s32.totalorder %v46, %v28
    %vm49 = vcmp.eq.s32.totalorder %v46, %v29
    %vm50 = vcmp.eq.s32.totalorder %v46, %v30
    %vm51 = vcmp.eq.s32.totalorder %v46, %v31
    %vm52 = vcmp.eq.s32.totalorder %v46, %v32
    %vm53 = vcmp.eq.s32.totalorder %v46, %v33
    %vm54 = vcmp.eq.s32.totalorder %v46, %v34
    %vm55 = vcmp.eq.s32.totalorder %v46, %v35
    %vm56 = vcmp.eq.s32.totalorder %v46, %v36
    %vm57 = vcmp.eq.s32.totalorder %v46, %v37
    %vm58 = vcmp.eq.s32.totalorder %v46, %v38
    %vm59 = vcmp.eq.s32.totalorder %v46, %v39
    %vm60 = vcmp.eq.s32.totalorder %v46, %v40
    %vm61 = vcmp.eq.s32.totalorder %v46, %v41
    %vm62 = vcmp.eq.s32.totalorder %v46, %v42
    %v63 = vsel %vm47, 1, 0
    %v64 = vsel %vm48, 1, 0
    %v65 = vsel %vm49, 1, 0
    %v66 = vsel %vm50, 1, 0
    %v67 = vsel %vm51, 1, 0
    %v68 = vsel %vm52, 1, 0
    %v69 = vsel %vm53, 1, 0
    %v70 = vsel %vm54, 1, 0
    %v71 = vsel %vm55, 1, 0
    %v72 = vsel %vm56, 1, 0
    %v73 = vsel %vm57, 1, 0
    %v74 = vsel %vm58, 1, 0
    %v75 = vsel %vm59, 1, 0
    %v76 = vsel %vm60, 1, 0
    %v77 = vsel %vm61, 1, 0
    %v78 = vsel %vm62, 1, 0
    %v79 = vcvt.s32.f32 %v63
    %v80 = vcvt.s32.f32 %v64
    %v81 = vcvt.s32.f32 %v65
    %v82 = vcvt.s32.f32 %v66
    %v83 = vcvt.s32.f32 %v67
    %v84 = vcvt.s32.f32 %v68
    %v85 = vcvt.s32.f32 %v69
    %v86 = vcvt.s32.f32 %v70
    %v87 = vcvt.s32.f32 %v71
    %v88 = vcvt.s32.f32 %v72
    %v89 = vcvt.s32.f32 %v73
    %v90 = vcvt.s32.f32 %v74
    %v91 = vcvt.s32.f32 %v75
    %v92 = vcvt.s32.f32 %v76
    %v93 = vcvt.s32.f32 %v77
    %v94 = vcvt.s32.f32 %v78
    %v95 = vld [vmem:[#allocation2] sm:$0xff]
    %v96 = vld [vmem:[#allocation2 + $0x8] sm:$0xff]
    %v97 = vld [vmem:[#allocation2 + $0x10] sm:$0xff]
    %v98 = vld [vmem:[#allocation2 + $0x18] sm:$0xff]
    %99 = vmatprep.subr.mxu0 0.0
    %100 = vmatpush1.msra.mxu0 %v94
    %101 = vmatprep.subr.mxu0 0.0
    %102 = vmatpush1.msra.mxu0 %v93
    %103 = vmatprep.subr.mxu0 0.0
    %104 = vmatpush1.msra.mxu0 %v92
    %105 = vmatprep.subr.mxu0 0.0
    %106 = vmatpush1.msra.mxu0 %v91
    %107 = vmatprep.subr.mxu0 0.0
    %108 = vmatpush1.msra.mxu0 %v90
    %109 = vmatprep.subr.mxu0 0.0
    %110 = vmatpush1.msra.mxu0 %v89
    %111 = vmatprep.subr.mxu0 0.0
    %112 = vmatpush1.msra.mxu0 %v88
    %113 = vmatprep.subr.mxu0 0.0
    %114 = vmatpush1.msra.mxu0 %v87
    %115 = vmatprep.subr.mxu0 0.0
    %116 = vmatpush1.msra.mxu0 %v86
    %117 = vmatprep.subr.mxu0 0.0
    %118 = vmatpush1.msra.mxu0 %v85
    %119 = vmatprep.subr.mxu0 0.0
    %120 = vmatpush1.msra.mxu0 %v84
    %121 = vmatprep.subr.mxu0 0.0
    %122 = vmatpush1.msra.mxu0 %v83
    %123 = vmatprep.subr.mxu0 0.0
    %124 = vmatpush1.msra.mxu0 %v82
    %125 = vmatprep.subr.mxu0 0.0
    %126 = vmatpush1.msra.mxu0 %v81
    %127 = vmatprep.subr.mxu0 0.0
    %128 = vmatpush1.msra.mxu0 %v80
    %129 = vmatprep.subr.mxu0 0.0
    %130 = vmatpush1.msra.mxu0 %v79
    %131 = vmatprep.subr.mxu0 0.0
    %132 = vmatpush2.msra.mxu0 0.0
    %133 = vmatprep.subr.mxu0 0.0
    %134 = vmatpush2.msra.mxu0 0.0
    %135 = vmatprep.subr.mxu0 0.0
    %136 = vmatpush2.msra.mxu0 0.0
    %137 = vmatprep.subr.mxu0 0.0
    %138 = vmatpush2.msra.mxu0 0.0
    %139 = vmatprep.subr.mxu0 0.0
    %140 = vmatpush2.msra.mxu0 0.0
    %141 = vmatprep.subr.mxu0 0.0
    %142 = vmatpush2.msra.mxu0 0.0
    %143 = vmatprep.subr.mxu0 0.0
    %144 = vmatpush2.msra.mxu0 0.0
    %145 = vmatprep.subr.mxu0 0.0
    %146 = vmatpush2.msra.mxu0 0.0
    %147 = vmatprep.subr.mxu0 0.0
    %148 = vmatpush2.msra.mxu0 0.0
    %149 = vmatprep.subr.mxu0 0.0
    %150 = vmatpush2.msra.mxu0 0.0
    %151 = vmatprep.subr.mxu0 0.0
    %152 = vmatpush2.msra.mxu0 0.0
    %153 = vmatprep.subr.mxu0 0.0
    %154 = vmatpush2.msra.mxu0 0.0
    %155 = vmatprep.subr.mxu0 0.0
    %156 = vmatpush2.msra.mxu0 0.0
    %157 = vmatprep.subr.mxu0 0.0
    %158 = vmatpush2.msra.mxu0 0.0
    %159 = vmatprep.subr.mxu0 0.0
    %160 = vmatpush2.msra.mxu0 0.0
    %161 = vmatprep.subr.mxu0 0.0
    %162 = vmatpush2.msra.mxu0 0.0
    %163 = vmatprep.mubr.f32.mxu0 0.0
    %164 = vmatmul.mubr.f32.gmra.mxu0 %v95
    %v165 = vpop.f32.mrf.mxu0
    %v166 = vadd.f32 0.0, %v165
    %v167 = vpop.f32.mrf.mxu0
    %168 = vmatprep.mubr.f32.mxu0 0.0
    %169 = vmatmul.mubr.f32.gmra.mxu0 %v96
    %v170 = vpop.f32.mrf.mxu0
    %v171 = vadd.f32 0.0, %v170
    %v172 = vpop.f32.mrf.mxu0
    %173 = vmatprep.mubr.f32.mxu0 0.0
    %174 = vmatmul.mubr.f32.gmra.mxu0 %v97
    %v175 = vpop.f32.mrf.mxu0
    %v176 = vadd.f32 0.0, %v175
    %v177 = vpop.f32.mrf.mxu0
    %178 = vmatprep.mubr.f32.mxu0 0.0
    %179 = vmatmul.mubr.f32.gmra.mxu0 %v98
    %v180 = vpop.f32.mrf.mxu0
    %v181 = vadd.f32 0.0, %v180
    %v182 = vpop.f32.mrf.mxu0
    %183 = vdwg.mxu0
    %184 = vst [vmem:[%s2] sm:$0xff] %v166
    %185 = vst [vmem:[%s2 + $0x8] sm:$0xff] %v171
    %186 = vst [vmem:[%s2 + $0x10] sm:$0xff] %v176
    %187 = vst [vmem:[%s2 + $0x18] sm:$0xff] %v181
    // Predicated region
    $region14: #{embedding_forward.1} parent=1 // pred_check
      _
    $region15: #{embedding_forward.1} parent=1 // pred_check_branch
      %189 = sbr.rel (0) target = $region17
    $region16: #{embedding_forward.1} parent=1 // pred_region
      _
    $region17: #{embedding_forward.1} parent=1 // pred_fallthru
      _
    // Predicated region
    $region18: #{embedding_forward.1} parent=1 // pred_check
      _
    $region19: #{embedding_forward.1} parent=1 // pred_check_branch
      %191 = sbr.rel (0) target = $region21
    $region20: #{embedding_forward.1} parent=1 // pred_region
      _
    $region21: #{embedding_forward.1} parent=1 // pred_fallthru
      _
    %192 = vsyncpa [#allocation3], 1

</llo_original>
